<compile_context>
chip_gen: v5e
topology: v5e:2x2
jax: 0.10.0
libtpu: 0.0.40
codegen_flags: <defaults>
</compile_context>

<pallas_src>
import functools

import jax
import jax.numpy as jnp
from jax import lax
from jax.experimental import pallas as pl
from jax.experimental.pallas import tpu as pltpu

LN_EPS = 1e-5
_LANE = 128
_SUBLANE = 8


def _round_up(x, m):
    return ((x + m - 1) // m) * m


def _layer_norm_padded(x, gamma, beta, inv_d):
    # Padded feature lanes of x are zero by construction, so plain sums over
    # the padded width scaled by 1/D_true give exact statistics over the true
    # feature dim.  gamma/beta are zero in padded lanes -> output stays zero.
    mu = jnp.sum(x, axis=-1, keepdims=True) * inv_d
    var = jnp.sum(x * x, axis=-1, keepdims=True) * inv_d - mu * mu
    return (x - mu) * lax.rsqrt(var + LN_EPS) * gamma + beta


def _gelu_tanh(x):
    # TODO(synk): PyTorch nn.GELU() default is erf-based; tanh approximation is
    # used for robust TPU/EUP lowering (~1e-3 level divergence).
    c = jnp.float32(0.7978845608028654)  # sqrt(2/pi)
    return 0.5 * x * (1.0 + jnp.tanh(c * (x + 0.044715 * x * x * x)))


def _apply_layer(x, vecs, wq, w1, w2, *, d_pad, h_pad, inv_d):
    """One transformer layer on a resident f32 (tm, Dp) token tile."""
    g1 = vecs[0:1, :d_pad]
    be1 = vecs[1:2, :d_pad]
    bq = vecs[2:3, :d_pad]
    g2 = vecs[3:4, :d_pad]
    be2 = vecs[4:5, :d_pad]
    b1 = vecs[5:6, :h_pad]
    b2 = vecs[6:7, :d_pad]

    # sublayer 1: LayerNorm -> QuaternionLinear -> residual
    xn = _layer_norm_padded(x, g1, be1, inv_d)
    y = jnp.dot(xn.astype(jnp.bfloat16), wq,
                preferred_element_type=jnp.float32) + bq
    t = y + x

    # sublayer 2: LayerNorm -> Linear -> GELU -> Linear -> residual
    tn = _layer_norm_padded(t, g2, be2, inv_d)
    h = jnp.dot(tn.astype(jnp.bfloat16), w1,
                preferred_element_type=jnp.float32) + b1
    h = _gelu_tanh(h).astype(jnp.bfloat16)      # bf16 temp: halves the (tm,Hp) live buffer
    f = jnp.dot(h, w2, preferred_element_type=jnp.float32) + b2
    return f + t


# ----------------------------------------------------------------------------
# Kernel bodies
# ----------------------------------------------------------------------------
def _resident_kernel(x_ref, vecs_ref, wq_ref, w1_ref, w2_ref, o_ref, acc_ref,
                     *, depth, d_pad, h_pad, inv_d):
    """Weights resident in VMEM (fetched once); depth loop inside the kernel."""
    acc_ref[...] = x_ref[...].astype(jnp.float32)

    def run_layer(layer):
        acc_ref[...] = _apply_layer(
            acc_ref[...], vecs_ref[layer], wq_ref[layer], w1_ref[layer],
            w2_ref[layer], d_pad=d_pad, h_pad=h_pad, inv_d=inv_d)

    if depth <= 8:
        for layer in range(depth):          # static unroll for small depth
            run_layer(layer)
    else:
        @pl.loop(0, depth)
        def _(layer):
            run_layer(layer)

    o_ref[...] = acc_ref[...].astype(o_ref.dtype)


def _stream_kernel(x_ref, vecs_ref, wq_ref, w1_ref, w2_ref, o_ref, acc_ref,
                   *, d_pad, h_pad, inv_d):
    """Per-layer weights streamed over the depth grid axis; token tile resident."""
    d = pl.program_id(1)

    @pl.when(d == 0)
    def _():
        acc_ref[...] = x_ref[...].astype(jnp.float32)

    acc_ref[...] = _apply_layer(
        acc_ref[...], vecs_ref[...], wq_ref[...], w1_ref[...], w2_ref[...],
        d_pad=d_pad, h_pad=h_pad, inv_d=inv_d)

    @pl.when(d == pl.num_programs(1) - 1)
    def _():
        o_ref[...] = acc_ref[...].astype(o_ref.dtype)


# ----------------------------------------------------------------------------
# pallas_call builders
# ----------------------------------------------------------------------------
def _call_resident(x2d, vecs, wq, w1, w2, tm, d_true, vmem_limit):
    Mp, Dp = x2d.shape
    depth, _, Hp = vecs.shape
    kernel = functools.partial(_resident_kernel, depth=depth, d_pad=Dp,
                               h_pad=Hp, inv_d=float(1.0 / d_true))
    wbytes = depth * ((Dp * Dp + 2 * Dp * Hp) * 2 + 8 * Hp * 4)
    cost = pl.CostEstimate(
        flops=2 * Mp * depth * Dp * (Dp + 2 * Hp),
        transcendentals=Mp * depth * Hp,
        bytes_accessed=Mp * Dp * (2 + 4) + wbytes,   # weights read exactly once
    )
    return pl.pallas_call(
        kernel,
        out_shape=jax.ShapeDtypeStruct((Mp, Dp), jnp.float32),
        grid_spec=pltpu.PrefetchScalarGridSpec(
            num_scalar_prefetch=0,
            grid=(Mp // tm,),
            in_specs=[
                pl.BlockSpec((tm, Dp), lambda i: (i, 0)),
                # constant block index -> the full weight stack is DMA'd once
                pl.BlockSpec((depth, 8, Hp), lambda i: (0, 0, 0)),
                pl.BlockSpec((depth, Dp, Dp), lambda i: (0, 0, 0)),
                pl.BlockSpec((depth, Dp, Hp), lambda i: (0, 0, 0)),
                pl.BlockSpec((depth, Hp, Dp), lambda i: (0, 0, 0)),
            ],
            out_specs=pl.BlockSpec((tm, Dp), lambda i: (i, 0)),
            scratch_shapes=[pltpu.VMEM((tm, Dp), jnp.float32)],
        ),
        compiler_params=pltpu.CompilerParams(
            dimension_semantics=("parallel",),
            vmem_limit_bytes=vmem_limit,
        ),
        cost_estimate=cost,
    )(x2d, vecs, wq, w1, w2)


def _call_stream(x2d, vecs, wq, w1, w2, tm, d_true, vmem_limit):
    Mp, Dp = x2d.shape
    depth, _, Hp = vecs.shape
    kernel = functools.partial(_stream_kernel, d_pad=Dp, h_pad=Hp,
                               inv_d=float(1.0 / d_true))
    wbytes = depth * ((Dp * Dp + 2 * Dp * Hp) * 2 + 8 * Hp * 4)
    cost = pl.CostEstimate(
        flops=2 * Mp * depth * Dp * (Dp + 2 * Hp),
        transcendentals=Mp * depth * Hp,
        bytes_accessed=Mp * Dp * (2 + 4) + (Mp // tm) * wbytes,  # re-streamed per row tile
    )
    # NOTE: if profiling shows exposed weight DMA at layer boundaries, add
    # pipeline_mode=pl.Buffered(3) to the three large weight BlockSpecs below.
    return pl.pallas_call(
        kernel,
        out_shape=jax.ShapeDtypeStruct((Mp, Dp), jnp.float32),
        grid_spec=pltpu.PrefetchScalarGridSpec(
            num_scalar_prefetch=0,
            grid=(Mp // tm, depth),
            in_specs=[
                # x tile: block index ignores depth -> fetched once per row tile
                pl.BlockSpec((tm, Dp), lambda i, d: (i, 0)),
                pl.BlockSpec((None, 8, Hp), lambda i, d: (d, 0, 0)),
                pl.BlockSpec((None, Dp, Dp), lambda i, d: (d, 0, 0)),
                pl.BlockSpec((None, Dp, Hp), lambda i, d: (d, 0, 0)),
                pl.BlockSpec((None, Hp, Dp), lambda i, d: (d, 0, 0)),
            ],
            out_specs=pl.BlockSpec((tm, Dp), lambda i, d: (i, 0)),
            scratch_shapes=[pltpu.VMEM((tm, Dp), jnp.float32)],
        ),
        compiler_params=pltpu.CompilerParams(
            dimension_semantics=("parallel", "arbitrary"),
            vmem_limit_bytes=vmem_limit,
        ),
        cost_estimate=cost,
    )(x2d, vecs, wq, w1, w2)


# ----------------------------------------------------------------------------
# Host-side planning / parameter packing
# ----------------------------------------------------------------------------
def _plan(M, D, H, depth, tm_req):
    Dp = _round_up(max(D, 1), _LANE)
    Hp = _round_up(max(H, 1), _LANE)
    Mp8 = _round_up(max(M, 1), _SUBLANE)

    tm = min(_round_up(tm_req, _SUBLANE), Mp8)
    # v7x megacore: keep >= 2 tiles on the parallel row axis when rows permit.
    if Mp8 >= 2 * _SUBLANE:
        tm = min(tm, _round_up((Mp8 + 1) // 2, _SUBLANE))
    tm = max(tm, _SUBLANE)

    def est(tm_, resident):
        tile = 2 * tm_ * Dp * 2 + 2 * tm_ * Dp * 4 + tm_ * Dp * 4  # x dbuf + out dbuf + acc
        temps = tm_ * (6 * Dp + 6 * Hp) * 4                        # generous live temps
        layers = depth if resident else 1
        w = 2 * layers * ((Dp * Dp + 2 * Dp * Hp) * 2 + 8 * Hp * 4)
        return tile + temps + w

    resident = est(tm, True) <= (44 << 20)   # fits v7x's 64 MiB with headroom
    if not resident:
        while tm > _SUBLANE and est(tm, False) > (100 << 20):
            tm = max(_SUBLANE, _round_up(tm // 2, _SUBLANE))

    Mp = _round_up(M, tm)
    vmem_limit = int(min(128 << 20, max(32 << 20, est(tm, resident) + (16 << 20))))
    return Dp, Hp, tm, Mp, resident, vmem_limit


def _pack_params(params, Dp, Hp):
    """Pad weights to lane multiples (bf16) and pack the 7 small vectors per
    layer into one (depth, 8, Hp) f32 array (single DMA operand)."""
    def padw(w, r, c):
        return jnp.pad(w, ((0, r - w.shape[0]), (0, c - w.shape[1])))

    vecs_l, wq_l, w1_l, w2_l = [], [], [], []
    for lp in params:
        rows = []
        for name in ("g1", "be1", "bq", "g2", "be2", "b1", "b2"):
            v = lp[name].reshape(-1).astype(jnp.float32)
            rows.append(jnp.pad(v, (0, Hp - v.shape[0])))
        rows.append(jnp.zeros((Hp,), jnp.float32))
        vecs_l.append(jnp.stack(rows))
        wq_l.append(padw(lp["wq"], Dp, Dp).astype(jnp.bfloat16))
        w1_l.append(padw(lp["w1"], Dp, Hp).astype(jnp.bfloat16))
        w2_l.append(padw(lp["w2"], Hp, Dp).astype(jnp.bfloat16))
    return jnp.stack(vecs_l), jnp.stack(wq_l), jnp.stack(w1_l), jnp.stack(w2_l)


@functools.partial(jax.jit, static_argnames=("tm", "force_stream"))
def quater_cross_transformer(h_tok, l_tok, zh_tok, zl_tok, params, *,
                             tm=1024, force_stream=False):
    # concat four token streams along the feature axis (dim=2)
    tokens = jnp.concatenate([h_tok, l_tok, zh_tok, zl_tok], axis=2)
    B, N, D = tokens.shape
    depth = len(params)
    H = params[0]["w1"].shape[1]
    M = B * N

    Dp, Hp, tm_eff, Mp, resident, vmem_limit = _plan(M, D, H, depth, tm)
    if force_stream:
        resident = False

    # bf16 input halves the input DMA / double buffer; zero-pad rows + lanes.
    x2d = tokens.reshape(M, D).astype(jnp.bfloat16)
    x2d = jnp.pad(x2d, ((0, Mp - M), (0, Dp - D)))

    vecs, wq, w1, w2 = _pack_params(params, Dp, Hp)

    if resident:
        out = _call_resident(x2d, vecs, wq, w1, w2, tm_eff, D, vmem_limit)
    else:
        out = _call_stream(x2d, vecs, wq, w1, w2, tm_eff, D, vmem_limit)
    return out[:M, :D].reshape(B, N, D)


# ----------------------------------------------------------------------------
# Parameter construction + pure-JAX reference
# ----------------------------------------------------------------------------
def make_quaternion_weight(r_w, i_w, j_w, k_w):
    """Assemble the (4h, 4h) Hamilton-product matrix used by QuaternionLinear.

    output = input @ W_quat.
    TODO(synk): verify sign/layout against the exact PyTorch QuaternionLinear
    implementation (source not provided with the module).
    """
    row_r = jnp.concatenate([r_w, -i_w, -j_w, -k_w], axis=0)
    row_i = jnp.concatenate([i_w, r_w, -k_w, j_w], axis=0)
    row_j = jnp.concatenate([j_w, k_w, r_w, -i_w], axis=0)
    row_k = jnp.concatenate([k_w, -j_w, i_w, r_w], axis=0)
    return jnp.concatenate([row_r, row_i, row_j, row_k], axis=1)


def init_params(key, h_dim, depth):
    """Deterministic synthetic parameter init (shapes match the nn.Module)."""
    D = 4 * h_dim
    H = 2 * D
    layers = []
    for _ in range(depth):
        keys = jax.random.split(key, 10)
        key = keys[0]
        s = 0.05
        r_w = s * jax.random.normal(keys[1], (h_dim, h_dim), jnp.float32)
        i_w = s * jax.random.normal(keys[2], (h_dim, h_dim), jnp.float32)
        j_w = s * jax.random.normal(keys[3], (h_dim, h_dim), jnp.float32)
        k_w = s * jax.random.normal(keys[4], (h_dim, h_dim), jnp.float32)
        layers.append(dict(
            g1=jnp.ones((1, D), jnp.float32),
            be1=jnp.zeros((1, D), jnp.float32),
            wq=make_quaternion_weight(r_w, i_w, j_w, k_w),            # (D, D)
            bq=s * jax.random.normal(keys[5], (1, D), jnp.float32),
            g2=jnp.ones((1, D), jnp.float32),
            be2=jnp.zeros((1, D), jnp.float32),
            w1=s * jax.random.normal(keys[6], (D, H), jnp.float32),   # FF in
            b1=s * jax.random.normal(keys[7], (1, H), jnp.float32),
            w2=s * jax.random.normal(keys[8], (H, D), jnp.float32),   # FF out
            b2=s * jax.random.normal(keys[9], (1, D), jnp.float32),
        ))
    return layers


def _reference_forward(h_tok, l_tok, zh_tok, zl_tok, params):
    """Pure-JAX f32 reference (same GELU approximation)."""
    def ln(x, g, b):
        mu = jnp.mean(x, axis=-1, keepdims=True)
        var = jnp.mean((x - mu) ** 2, axis=-1, keepdims=True)
        return (x - mu) * lax.rsqrt(var + LN_EPS) * g + b

    x = jnp.concatenate([h_tok, l_tok, zh_tok, zl_tok], axis=2)
    for lp in params:
        xn = ln(x, lp["g1"], lp["be1"])
        x = xn @ lp["wq"] + lp["bq"] + x
        tn = ln(x, lp["g2"], lp["be2"])
        h = _gelu_tanh(tn @ lp["w1"] + lp["b1"])
        x = h @ lp["w2"] + lp["b2"] + x
    return x


if __name__ == "__main__":
    key = jax.random.PRNGKey(0)
    h_dim = 8          # per-stream feature dim -> model dim D = 4*h_dim = 32
    depth = 2
    B, N = 2, 8        # batch, sequence length

    k1, k2, k3, k4, kp = jax.random.split(key, 5)
    h_tok = jax.random.normal(k1, (B, N, h_dim), jnp.float32)
    l_tok = jax.random.normal(k2, (B, N, h_dim), jnp.float32)
    zh_tok = jax.random.normal(k3, (B, N, h_dim), jnp.float32)
    zl_tok = jax.random.normal(k4, (B, N, h_dim), jnp.float32)

    params = init_params(kp, h_dim, depth)
    ref = _reference_forward(h_tok, l_tok, zh_tok, zl_tok, params)

    # Default path (resident weight stack in VMEM for this small config).
    out = quater_cross_transformer(h_tok, l_tok, zh_tok, zl_tok, params)
    jax.block_until_ready(out)
    assert out.shape == (B, N, 4 * h_dim)
    err = float(jnp.max(jnp.abs(out - ref)))
    assert err < 5e-2, f"resident path error too large: {err}"

    # Also exercise the streaming-weights path (used for large configs).
    out_s = quater_cross_transformer(h_tok, l_tok, zh_tok, zl_tok, params,
                                     force_stream=True)
    jax.block_until_ready(out_s)
    err_s = float(jnp.max(jnp.abs(out_s - ref)))
    assert err_s < 5e-2, f"streaming path error too large: {err_s}"

    print("KERNEL_OK")
</pallas_src>

<mosaic_0001>
module attributes {stable_mosaic.version = 11 : i64} {
  func.func @_resident_kernel(%arg0: i32, %arg1: memref<8x128xbf16, #tpu.memory_space<vmem>>, %arg2: memref<2x8x128xf32, #tpu.memory_space<vmem>>, %arg3: memref<2x128x128xbf16, #tpu.memory_space<vmem>>, %arg4: memref<2x128x128xbf16, #tpu.memory_space<vmem>>, %arg5: memref<2x128x128xbf16, #tpu.memory_space<vmem>>, %arg6: memref<8x128xf32, #tpu.memory_space<vmem>>, %arg7: memref<8x128xf32, #tpu.memory_space<vmem>>) attributes {dimension_semantics = [#tpu.dimension_semantics<parallel>], iteration_bounds = array<i64: 2>, scalar_prefetch = 0 : i64, scratch_operands = 1 : i64, tpu.core_type = #tpu.core_type<tc>, window_params = [{transform_indices = @transform_0, window_bounds = array<i64: 8, 128>}, {pipeline_mode = #tpu.pipeline_mode<synchronous>, transform_indices = @transform_1, window_bounds = array<i64: 2, 8, 128>}, {pipeline_mode = #tpu.pipeline_mode<synchronous>, transform_indices = @transform_2, window_bounds = array<i64: 2, 128, 128>}, {pipeline_mode = #tpu.pipeline_mode<synchronous>, transform_indices = @transform_3, window_bounds = array<i64: 2, 128, 128>}, {pipeline_mode = #tpu.pipeline_mode<synchronous>, transform_indices = @transform_4, window_bounds = array<i64: 2, 128, 128>}, {transform_indices = @transform_5, window_bounds = array<i64: 8, 128>}]} {
    %c0 = arith.constant 0 : index
    %c0_0 = arith.constant 0 : index
    %0 = vector.load %arg1[%c0, %c0_0] : memref<8x128xbf16, #tpu.memory_space<vmem>>, vector<8x128xbf16>
    %1 = arith.extf %0 : vector<8x128xbf16> to vector<8x128xf32>
    %c0_1 = arith.constant 0 : index
    %c0_2 = arith.constant 0 : index
    %2 = vector.load %arg7[%c0_1, %c0_2] : memref<8x128xf32, #tpu.memory_space<vmem>>, vector<8x128xf32>
    tpu.vector_store %arg7[%c0_1, %c0_2], %1 {strides = array<i32>} : memref<8x128xf32, #tpu.memory_space<vmem>>, vector<8x128xf32>,
    %c0_3 = arith.constant 0 : index
    %c0_4 = arith.constant 0 : index
    %3 = vector.load %arg7[%c0_3, %c0_4] : memref<8x128xf32, #tpu.memory_space<vmem>>, vector<8x128xf32>
    %c0_5 = arith.constant 0 : index
    %c0_6 = arith.constant 0 : index
    %c0_7 = arith.constant 0 : index
    %4 = vector.load %arg2[%c0_5, %c0_6, %c0_7] : memref<2x8x128xf32, #tpu.memory_space<vmem>>, vector<1x8x128xf32>
    %5 = vector.shape_cast %4 : vector<1x8x128xf32> to vector<8x128xf32>
    %c0_8 = arith.constant 0 : index
    %c0_9 = arith.constant 0 : index
    %c0_10 = arith.constant 0 : index
    %6 = vector.load %arg3[%c0_8, %c0_9, %c0_10] : memref<2x128x128xbf16, #tpu.memory_space<vmem>>, vector<1x128x128xbf16>
    %7 = vector.shape_cast %6 : vector<1x128x128xbf16> to vector<128x128xbf16>
    %c0_11 = arith.constant 0 : index
    %c0_12 = arith.constant 0 : index
    %c0_13 = arith.constant 0 : index
    %8 = vector.load %arg4[%c0_11, %c0_12, %c0_13] : memref<2x128x128xbf16, #tpu.memory_space<vmem>>, vector<1x128x128xbf16>
    %9 = vector.shape_cast %8 : vector<1x128x128xbf16> to vector<128x128xbf16>
    %c0_14 = arith.constant 0 : index
    %c0_15 = arith.constant 0 : index
    %c0_16 = arith.constant 0 : index
    %10 = vector.load %arg5[%c0_14, %c0_15, %c0_16] : memref<2x128x128xbf16, #tpu.memory_space<vmem>>, vector<1x128x128xbf16>
    %11 = vector.shape_cast %10 : vector<1x128x128xbf16> to vector<128x128xbf16>
    %12 = vector.extract_strided_slice %5 {offsets = [0, 0], sizes = [1, 128], strides = [1, 1]} : vector<8x128xf32> to vector<1x128xf32>
    %13 = vector.extract_strided_slice %5 {offsets = [1, 0], sizes = [1, 128], strides = [1, 1]} : vector<8x128xf32> to vector<1x128xf32>
    %14 = vector.extract_strided_slice %5 {offsets = [2, 0], sizes = [1, 128], strides = [1, 1]} : vector<8x128xf32> to vector<1x128xf32>
    %15 = vector.extract_strided_slice %5 {offsets = [3, 0], sizes = [1, 128], strides = [1, 1]} : vector<8x128xf32> to vector<1x128xf32>
    %16 = vector.extract_strided_slice %5 {offsets = [4, 0], sizes = [1, 128], strides = [1, 1]} : vector<8x128xf32> to vector<1x128xf32>
    %17 = vector.extract_strided_slice %5 {offsets = [5, 0], sizes = [1, 128], strides = [1, 1]} : vector<8x128xf32> to vector<1x128xf32>
    %18 = vector.extract_strided_slice %5 {offsets = [6, 0], sizes = [1, 128], strides = [1, 1]} : vector<8x128xf32> to vector<1x128xf32>
    %cst = arith.constant dense<0.000000e+00> : vector<8xf32>
    %19 = vector.multi_reduction <add>, %3, %cst [1] : vector<8x128xf32> to vector<8xf32>
    %20 = vector.shape_cast %19 : vector<8xf32> to vector<8x1xf32>
    %cst_17 = arith.constant 3.125000e-02 : f32
    %21 = vector.broadcast %cst_17 : f32 to vector<8x1xf32>
    %22 = arith.mulf %20, %21 : vector<8x1xf32>
    %23 = arith.mulf %3, %3 : vector<8x128xf32>
    %cst_18 = arith.constant dense<0.000000e+00> : vector<8xf32>
    %24 = vector.multi_reduction <add>, %23, %cst_18 [1] : vector<8x128xf32> to vector<8xf32>
    %25 = vector.shape_cast %24 : vector<8xf32> to vector<8x1xf32>
    %cst_19 = arith.constant 3.125000e-02 : f32
    %26 = vector.broadcast %cst_19 : f32 to vector<8x1xf32>
    %27 = arith.mulf %25, %26 : vector<8x1xf32>
    %28 = arith.mulf %22, %22 : vector<8x1xf32>
    %29 = arith.subf %27, %28 : vector<8x1xf32>
    %30 = vector.broadcast %22 : vector<8x1xf32> to vector<8x128xf32>
    %31 = arith.subf %3, %30 : vector<8x128xf32>
    %cst_20 = arith.constant 9.99999974E-6 : f32
    %32 = vector.broadcast %cst_20 : f32 to vector<8x1xf32>
    %33 = arith.addf %29, %32 : vector<8x1xf32>
    %34 = math.rsqrt %33 : vector<8x1xf32>
    %35 = vector.broadcast %34 : vector<8x1xf32> to vector<8x128xf32>
    %36 = arith.mulf %31, %35 : vector<8x128xf32>
    %37 = vector.broadcast %12 : vector<1x128xf32> to vector<8x128xf32>
    %38 = arith.mulf %36, %37 : vector<8x128xf32>
    %39 = vector.broadcast %13 : vector<1x128xf32> to vector<8x128xf32>
    %40 = arith.addf %38, %39 : vector<8x128xf32>
    %41 = arith.truncf %40 : vector<8x128xf32> to vector<8x128xbf16>
    %cst_21 = arith.constant dense<0.000000e+00> : vector<8x128xf32>
    %42 = tpu.matmul %41, %7, %cst_21 {dimension_numbers = #tpu.dot_dimension_numbers<[1], [0], [0], [1], [0, 0, 1, 1], [], []>} : vector<8x128xbf16>, vector<128x128xbf16>, vector<8x128xf32> -> vector<8x128xf32>
    %43 = vector.broadcast %14 : vector<1x128xf32> to vector<8x128xf32>
    %44 = arith.addf %42, %43 : vector<8x128xf32>
    %45 = arith.addf %44, %3 : vector<8x128xf32>
    %cst_22 = arith.constant dense<0.000000e+00> : vector<8xf32>
    %46 = vector.multi_reduction <add>, %45, %cst_22 [1] : vector<8x128xf32> to vector<8xf32>
    %47 = vector.shape_cast %46 : vector<8xf32> to vector<8x1xf32>
    %cst_23 = arith.constant 3.125000e-02 : f32
    %48 = vector.broadcast %cst_23 : f32 to vector<8x1xf32>
    %49 = arith.mulf %47, %48 : vector<8x1xf32>
    %50 = arith.mulf %45, %45 : vector<8x128xf32>
    %cst_24 = arith.constant dense<0.000000e+00> : vector<8xf32>
    %51 = vector.multi_reduction <add>, %50, %cst_24 [1] : vector<8x128xf32> to vector<8xf32>
    %52 = vector.shape_cast %51 : vector<8xf32> to vector<8x1xf32>
    %cst_25 = arith.constant 3.125000e-02 : f32
    %53 = vector.broadcast %cst_25 : f32 to vector<8x1xf32>
    %54 = arith.mulf %52, %53 : vector<8x1xf32>
    %55 = arith.mulf %49, %49 : vector<8x1xf32>
    %56 = arith.subf %54, %55 : vector<8x1xf32>
    %57 = vector.broadcast %49 : vector<8x1xf32> to vector<8x128xf32>
    %58 = arith.subf %45, %57 : vector<8x128xf32>
    %cst_26 = arith.constant 9.99999974E-6 : f32
    %59 = vector.broadcast %cst_26 : f32 to vector<8x1xf32>
    %60 = arith.addf %56, %59 : vector<8x1xf32>
    %61 = math.rsqrt %60 : vector<8x1xf32>
    %62 = vector.broadcast %61 : vector<8x1xf32> to vector<8x128xf32>
    %63 = arith.mulf %58, %62 : vector<8x128xf32>
    %64 = vector.broadcast %15 : vector<1x128xf32> to vector<8x128xf32>
    %65 = arith.mulf %63, %64 : vector<8x128xf32>
    %66 = vector.broadcast %16 : vector<1x128xf32> to vector<8x128xf32>
    %67 = arith.addf %65, %66 : vector<8x128xf32>
    %68 = arith.truncf %67 : vector<8x128xf32> to vector<8x128xbf16>
    %cst_27 = arith.constant dense<0.000000e+00> : vector<8x128xf32>
    %69 = tpu.matmul %68, %9, %cst_27 {dimension_numbers = #tpu.dot_dimension_numbers<[1], [0], [0], [1], [0, 0, 1, 1], [], []>} : vector<8x128xbf16>, vector<128x128xbf16>, vector<8x128xf32> -> vector<8x128xf32>
    %70 = vector.broadcast %17 : vector<1x128xf32> to vector<8x128xf32>
    %71 = arith.addf %69, %70 : vector<8x128xf32>
    %cst_28 = arith.constant 5.000000e-01 : f32
    %72 = vector.broadcast %cst_28 : f32 to vector<8x128xf32>
    %73 = arith.mulf %72, %71 : vector<8x128xf32>
    %cst_29 = arith.constant 4.471500e-02 : f32
    %74 = vector.broadcast %cst_29 : f32 to vector<8x128xf32>
    %75 = arith.mulf %74, %71 : vector<8x128xf32>
    %76 = arith.mulf %75, %71 : vector<8x128xf32>
    %77 = arith.mulf %76, %71 : vector<8x128xf32>
    %78 = arith.addf %71, %77 : vector<8x128xf32>
    %cst_30 = arith.constant 0.797884583 : f32
    %79 = vector.broadcast %cst_30 : f32 to vector<8x128xf32>
    %80 = arith.mulf %79, %78 : vector<8x128xf32>
    %81 = math.tanh %80 : vector<8x128xf32>
    %cst_31 = arith.constant 1.000000e+00 : f32
    %82 = vector.broadcast %cst_31 : f32 to vector<8x128xf32>
    %83 = arith.addf %82, %81 : vector<8x128xf32>
    %84 = arith.mulf %73, %83 : vector<8x128xf32>
    %85 = arith.truncf %84 : vector<8x128xf32> to vector<8x128xbf16>
    %cst_32 = arith.constant dense<0.000000e+00> : vector<8x128xf32>
    %86 = tpu.matmul %85, %11, %cst_32 {dimension_numbers = #tpu.dot_dimension_numbers<[1], [0], [0], [1], [0, 0, 1, 1], [], []>} : vector<8x128xbf16>, vector<128x128xbf16>, vector<8x128xf32> -> vector<8x128xf32>
    %87 = vector.broadcast %18 : vector<1x128xf32> to vector<8x128xf32>
    %88 = arith.addf %86, %87 : vector<8x128xf32>
    %89 = arith.addf %88, %45 : vector<8x128xf32>
    %c0_33 = arith.constant 0 : index
    %c0_34 = arith.constant 0 : index
    %90 = vector.load %arg7[%c0_33, %c0_34] : memref<8x128xf32, #tpu.memory_space<vmem>>, vector<8x128xf32>
    tpu.vector_store %arg7[%c0_33, %c0_34], %89 {strides = array<i32>} : memref<8x128xf32, #tpu.memory_space<vmem>>, vector<8x128xf32>,
    %c0_35 = arith.constant 0 : index
    %c0_36 = arith.constant 0 : index
    %91 = vector.load %arg7[%c0_35, %c0_36] : memref<8x128xf32, #tpu.memory_space<vmem>>, vector<8x128xf32>
    %c1 = arith.constant 1 : index
    %c0_37 = arith.constant 0 : index
    %c0_38 = arith.constant 0 : index
    %92 = vector.load %arg2[%c1, %c0_37, %c0_38] : memref<2x8x128xf32, #tpu.memory_space<vmem>>, vector<1x8x128xf32>
    %93 = vector.shape_cast %92 : vector<1x8x128xf32> to vector<8x128xf32>
    %c1_39 = arith.constant 1 : index
    %c0_40 = arith.constant 0 : index
    %c0_41 = arith.constant 0 : index
    %94 = vector.load %arg3[%c1_39, %c0_40, %c0_41] : memref<2x128x128xbf16, #tpu.memory_space<vmem>>, vector<1x128x128xbf16>
    %95 = vector.shape_cast %94 : vector<1x128x128xbf16> to vector<128x128xbf16>
    %c1_42 = arith.constant 1 : index
    %c0_43 = arith.constant 0 : index
    %c0_44 = arith.constant 0 : index
    %96 = vector.load %arg4[%c1_42, %c0_43, %c0_44] : memref<2x128x128xbf16, #tpu.memory_space<vmem>>, vector<1x128x128xbf16>
    %97 = vector.shape_cast %96 : vector<1x128x128xbf16> to vector<128x128xbf16>
    %c1_45 = arith.constant 1 : index
    %c0_46 = arith.constant 0 : index
    %c0_47 = arith.constant 0 : index
    %98 = vector.load %arg5[%c1_45, %c0_46, %c0_47] : memref<2x128x128xbf16, #tpu.memory_space<vmem>>, vector<1x128x128xbf16>
    %99 = vector.shape_cast %98 : vector<1x128x128xbf16> to vector<128x128xbf16>
    %100 = vector.extract_strided_slice %93 {offsets = [0, 0], sizes = [1, 128], strides = [1, 1]} : vector<8x128xf32> to vector<1x128xf32>
    %101 = vector.extract_strided_slice %93 {offsets = [1, 0], sizes = [1, 128], strides = [1, 1]} : vector<8x128xf32> to vector<1x128xf32>
    %102 = vector.extract_strided_slice %93 {offsets = [2, 0], sizes = [1, 128], strides = [1, 1]} : vector<8x128xf32> to vector<1x128xf32>
    %103 = vector.extract_strided_slice %93 {offsets = [3, 0], sizes = [1, 128], strides = [1, 1]} : vector<8x128xf32> to vector<1x128xf32>
    %104 = vector.extract_strided_slice %93 {offsets = [4, 0], sizes = [1, 128], strides = [1, 1]} : vector<8x128xf32> to vector<1x128xf32>
    %105 = vector.extract_strided_slice %93 {offsets = [5, 0], sizes = [1, 128], strides = [1, 1]} : vector<8x128xf32> to vector<1x128xf32>
    %106 = vector.extract_strided_slice %93 {offsets = [6, 0], sizes = [1, 128], strides = [1, 1]} : vector<8x128xf32> to vector<1x128xf32>
    %cst_48 = arith.constant dense<0.000000e+00> : vector<8xf32>
    %107 = vector.multi_reduction <add>, %91, %cst_48 [1] : vector<8x128xf32> to vector<8xf32>
    %108 = vector.shape_cast %107 : vector<8xf32> to vector<8x1xf32>
    %cst_49 = arith.constant 3.125000e-02 : f32
    %109 = vector.broadcast %cst_49 : f32 to vector<8x1xf32>
    %110 = arith.mulf %108, %109 : vector<8x1xf32>
    %111 = arith.mulf %91, %91 : vector<8x128xf32>
    %cst_50 = arith.constant dense<0.000000e+00> : vector<8xf32>
    %112 = vector.multi_reduction <add>, %111, %cst_50 [1] : vector<8x128xf32> to vector<8xf32>
    %113 = vector.shape_cast %112 : vector<8xf32> to vector<8x1xf32>
    %cst_51 = arith.constant 3.125000e-02 : f32
    %114 = vector.broadcast %cst_51 : f32 to vector<8x1xf32>
    %115 = arith.mulf %113, %114 : vector<8x1xf32>
    %116 = arith.mulf %110, %110 : vector<8x1xf32>
    %117 = arith.subf %115, %116 : vector<8x1xf32>
    %118 = vector.broadcast %110 : vector<8x1xf32> to vector<8x128xf32>
    %119 = arith.subf %91, %118 : vector<8x128xf32>
    %cst_52 = arith.constant 9.99999974E-6 : f32
    %120 = vector.broadcast %cst_52 : f32 to vector<8x1xf32>
    %121 = arith.addf %117, %120 : vector<8x1xf32>
    %122 = math.rsqrt %121 : vector<8x1xf32>
    %123 = vector.broadcast %122 : vector<8x1xf32> to vector<8x128xf32>
    %124 = arith.mulf %119, %123 : vector<8x128xf32>
    %125 = vector.broadcast %100 : vector<1x128xf32> to vector<8x128xf32>
    %126 = arith.mulf %124, %125 : vector<8x128xf32>
    %127 = vector.broadcast %101 : vector<1x128xf32> to vector<8x128xf32>
    %128 = arith.addf %126, %127 : vector<8x128xf32>
    %129 = arith.truncf %128 : vector<8x128xf32> to vector<8x128xbf16>
    %cst_53 = arith.constant dense<0.000000e+00> : vector<8x128xf32>
    %130 = tpu.matmul %129, %95, %cst_53 {dimension_numbers = #tpu.dot_dimension_numbers<[1], [0], [0], [1], [0, 0, 1, 1], [], []>} : vector<8x128xbf16>, vector<128x128xbf16>, vector<8x128xf32> -> vector<8x128xf32>
    %131 = vector.broadcast %102 : vector<1x128xf32> to vector<8x128xf32>
    %132 = arith.addf %130, %131 : vector<8x128xf32>
    %133 = arith.addf %132, %91 : vector<8x128xf32>
    %cst_54 = arith.constant dense<0.000000e+00> : vector<8xf32>
    %134 = vector.multi_reduction <add>, %133, %cst_54 [1] : vector<8x128xf32> to vector<8xf32>
    %135 = vector.shape_cast %134 : vector<8xf32> to vector<8x1xf32>
    %cst_55 = arith.constant 3.125000e-02 : f32
    %136 = vector.broadcast %cst_55 : f32 to vector<8x1xf32>
    %137 = arith.mulf %135, %136 : vector<8x1xf32>
    %138 = arith.mulf %133, %133 : vector<8x128xf32>
    %cst_56 = arith.constant dense<0.000000e+00> : vector<8xf32>
    %139 = vector.multi_reduction <add>, %138, %cst_56 [1] : vector<8x128xf32> to vector<8xf32>
    %140 = vector.shape_cast %139 : vector<8xf32> to vector<8x1xf32>
    %cst_57 = arith.constant 3.125000e-02 : f32
    %141 = vector.broadcast %cst_57 : f32 to vector<8x1xf32>
    %142 = arith.mulf %140, %141 : vector<8x1xf32>
    %143 = arith.mulf %137, %137 : vector<8x1xf32>
    %144 = arith.subf %142, %143 : vector<8x1xf32>
    %145 = vector.broadcast %137 : vector<8x1xf32> to vector<8x128xf32>
    %146 = arith.subf %133, %145 : vector<8x128xf32>
    %cst_58 = arith.constant 9.99999974E-6 : f32
    %147 = vector.broadcast %cst_58 : f32 to vector<8x1xf32>
    %148 = arith.addf %144, %147 : vector<8x1xf32>
    %149 = math.rsqrt %148 : vector<8x1xf32>
    %150 = vector.broadcast %149 : vector<8x1xf32> to vector<8x128xf32>
    %151 = arith.mulf %146, %150 : vector<8x128xf32>
    %152 = vector.broadcast %103 : vector<1x128xf32> to vector<8x128xf32>
    %153 = arith.mulf %151, %152 : vector<8x128xf32>
    %154 = vector.broadcast %104 : vector<1x128xf32> to vector<8x128xf32>
    %155 = arith.addf %153, %154 : vector<8x128xf32>
    %156 = arith.truncf %155 : vector<8x128xf32> to vector<8x128xbf16>
    %cst_59 = arith.constant dense<0.000000e+00> : vector<8x128xf32>
    %157 = tpu.matmul %156, %97, %cst_59 {dimension_numbers = #tpu.dot_dimension_numbers<[1], [0], [0], [1], [0, 0, 1, 1], [], []>} : vector<8x128xbf16>, vector<128x128xbf16>, vector<8x128xf32> -> vector<8x128xf32>
    %158 = vector.broadcast %105 : vector<1x128xf32> to vector<8x128xf32>
    %159 = arith.addf %157, %158 : vector<8x128xf32>
    %cst_60 = arith.constant 5.000000e-01 : f32
    %160 = vector.broadcast %cst_60 : f32 to vector<8x128xf32>
    %161 = arith.mulf %160, %159 : vector<8x128xf32>
    %cst_61 = arith.constant 4.471500e-02 : f32
    %162 = vector.broadcast %cst_61 : f32 to vector<8x128xf32>
    %163 = arith.mulf %162, %159 : vector<8x128xf32>
    %164 = arith.mulf %163, %159 : vector<8x128xf32>
    %165 = arith.mulf %164, %159 : vector<8x128xf32>
    %166 = arith.addf %159, %165 : vector<8x128xf32>
    %cst_62 = arith.constant 0.797884583 : f32
    %167 = vector.broadcast %cst_62 : f32 to vector<8x128xf32>
    %168 = arith.mulf %167, %166 : vector<8x128xf32>
    %169 = math.tanh %168 : vector<8x128xf32>
    %cst_63 = arith.constant 1.000000e+00 : f32
    %170 = vector.broadcast %cst_63 : f32 to vector<8x128xf32>
    %171 = arith.addf %170, %169 : vector<8x128xf32>
    %172 = arith.mulf %161, %171 : vector<8x128xf32>
    %173 = arith.truncf %172 : vector<8x128xf32> to vector<8x128xbf16>
    %cst_64 = arith.constant dense<0.000000e+00> : vector<8x128xf32>
    %174 = tpu.matmul %173, %99, %cst_64 {dimension_numbers = #tpu.dot_dimension_numbers<[1], [0], [0], [1], [0, 0, 1, 1], [], []>} : vector<8x128xbf16>, vector<128x128xbf16>, vector<8x128xf32> -> vector<8x128xf32>
    %175 = vector.broadcast %106 : vector<1x128xf32> to vector<8x128xf32>
    %176 = arith.addf %174, %175 : vector<8x128xf32>
    %177 = arith.addf %176, %133 : vector<8x128xf32>
    %c0_65 = arith.constant 0 : index
    %c0_66 = arith.constant 0 : index
    %178 = vector.load %arg7[%c0_65, %c0_66] : memref<8x128xf32, #tpu.memory_space<vmem>>, vector<8x128xf32>
    tpu.vector_store %arg7[%c0_65, %c0_66], %177 {strides = array<i32>} : memref<8x128xf32, #tpu.memory_space<vmem>>, vector<8x128xf32>,
    %c0_67 = arith.constant 0 : index
    %c0_68 = arith.constant 0 : index
    %179 = vector.load %arg7[%c0_67, %c0_68] : memref<8x128xf32, #tpu.memory_space<vmem>>, vector<8x128xf32>
    %c0_69 = arith.constant 0 : index
    %c0_70 = arith.constant 0 : index
    %180 = vector.load %arg6[%c0_69, %c0_70] : memref<8x128xf32, #tpu.memory_space<vmem>>, vector<8x128xf32>
    tpu.vector_store %arg6[%c0_69, %c0_70], %179 {strides = array<i32>} : memref<8x128xf32, #tpu.memory_space<vmem>>, vector<8x128xf32>,
    return
  }
  func.func @transform_0(%arg0: i32) -> (i32, i32) {
    %c0_i32 = arith.constant 0 : i32
    %c0_i32_0 = arith.constant 0 : i32
    return %arg0, %c0_i32 : i32, i32
  }
  func.func @transform_1(%arg0: i32) -> (i32, i32, i32) {
    %c0_i32 = arith.constant 0 : i32
    %c0_i32_0 = arith.constant 0 : i32
    %c0_i32_1 = arith.constant 0 : i32
    %c0_i32_2 = arith.constant 0 : i32
    return %c0_i32, %c0_i32_0, %c0_i32_1 : i32, i32, i32
  }
  func.func @transform_2(%arg0: i32) -> (i32, i32, i32) {
    %c0_i32 = arith.constant 0 : i32
    %c0_i32_0 = arith.constant 0 : i32
    %c0_i32_1 = arith.constant 0 : i32
    %c0_i32_2 = arith.constant 0 : i32
    return %c0_i32, %c0_i32_0, %c0_i32_1 : i32, i32, i32
  }
  func.func @transform_3(%arg0: i32) -> (i32, i32, i32) {
    %c0_i32 = arith.constant 0 : i32
    %c0_i32_0 = arith.constant 0 : i32
    %c0_i32_1 = arith.constant 0 : i32
    %c0_i32_2 = arith.constant 0 : i32
    return %c0_i32, %c0_i32_0, %c0_i32_1 : i32, i32, i32
  }
  func.func @transform_4(%arg0: i32) -> (i32, i32, i32) {
    %c0_i32 = arith.constant 0 : i32
    %c0_i32_0 = arith.constant 0 : i32
    %c0_i32_1 = arith.constant 0 : i32
    %c0_i32_2 = arith.constant 0 : i32
    return %c0_i32, %c0_i32_0, %c0_i32_1 : i32, i32, i32
  }
  func.func @transform_5(%arg0: i32) -> (i32, i32) {
    %c0_i32 = arith.constant 0 : i32
    %c0_i32_0 = arith.constant 0 : i32
    return %arg0, %c0_i32 : i32, i32
  }
}

</mosaic_0001>

<llo_original>
// kernel: quater_cross_transformer.1
$region0: #{quater_cross_transformer.1}
  #allocation0 [shape = 'u32[]', space=smem, size = 0x4, offset = 0x4, fixed_abs, tag = 'smem constant byte address 0x4 - core index']
  #allocation1 [shape = 'u32[72,128]{1,0:T(1,128)}', space=vmem, size = 0x9000, scoped, tag = 'internal scratch']
  #allocation2 [shape = 'f32[8,128]{1,0:T(8,128)}', space=vmem, size = 0x1000, scoped, tag = 'scratch operand']
  %s0 = inlined_call_operand.vmem [shape: bf16[16,128], index: 0, kind: input, shape index: {}]
  %s1 = inlined_call_operand.vmem [shape: f32[2,8,128], index: 1, kind: input, shape index: {}]
  %s2 = inlined_call_operand.vmem [shape: bf16[2,128,128], index: 2, kind: input, shape index: {}]
  %s3 = inlined_call_operand.vmem [shape: bf16[2,128,128], index: 3, kind: input, shape index: {}]
  %s4 = inlined_call_operand.vmem [shape: bf16[2,128,128], index: 4, kind: input, shape index: {}]
  %s5 = inlined_call_operand.vmem [shape: f32[16,128], index: 5, kind: output, shape index: {}]
  %s6 = sld [smem:[#allocation0]]
  $region53: #{quater_cross_transformer.1} parent=0
    _
  %s8 = ssub.s32 1, %s6
  %s9 = scalar_select 0, %s8, %s6
  loop: start=0, step=1, limit=4
  $region2: #{quater_cross_transformer.1} parent=0 // loop_pre_header
    _
  $region3: #{quater_cross_transformer.1} parent=0 // loop_header
    %s11 = sphi 0, %s15
    %p12 = scmp.ge.s32.totalorder %s11, 4
    %s21 = sphi 0, %s23
    %s24 = sphi 0, %s21
    %s25 = sphi 0, %s24
    %s41 = sphi 0, %s25
    %s45 = sphi 0, %s45
    %s47 = sphi 0, %s45
    %s48 = sphi 0, %s47
    %s62 = sphi 0, %s48
    %s66 = sphi 0, %s66
    %s68 = sphi 0, %s66
    %s69 = sphi 0, %s68
    %s83 = sphi 0, %s69
    %s87 = sphi 0, %s87
    %s89 = sphi 0, %s87
    %s90 = sphi 0, %s89
    %s104 = sphi 0, %s90
    %s108 = sphi 0, %s108
    %s110 = sphi 0, %s108
    %s111 = sphi 0, %s110
    %s125 = sphi 0, %s111
    %s131 = sphi 0, %s133
    %s134 = sphi 0, %s131
    %s135 = sphi 0, %s134
    %s151 = sphi 0, %s135
  $region4: #{quater_cross_transformer.1} parent=0 // loop_header_branch
    %14 = sbr.rel (%p12) target = $region8
  $region5: #{quater_cross_transformer.1} parent=0 // loop_body
    %s16 = ssub.s32 %s11, 1
    %s17 = ssub.s32 %s11, 2
    %s18 = sadd.s32 %s11, 1
    %s19 = ssub.s32 %s11, %s18
    %p20 = scmp.eq.s32.totalorder %s19, 0
    %s22 = sadd.s32 %s21, 1
    %s23 = scalar_select %p20, %s21, %s22
    %p26 = pneg %p20
    %p27 = scmp.eq.s32.totalorder %s11, 1
    %p28 = por %p26, %p27
    %p29 = scmp.ne.s32.totalorder %s21, %s24
    %p30 = scmp.eq.s32.totalorder %s11, 0
    %p31 = por %p29, %p30
    %p32 = scmp.ne.s32.totalorder %s21, %s24
    %p33 = scmp.eq.s32.totalorder %s16, 1
    %p34 = por %p32, %p33
    %p35 = scmp.ne.s32.totalorder %s24, %s25
    %p36 = scmp.eq.s32.totalorder %s16, 0
    %p37 = por %p35, %p36
    %p38 = scmp.ne.s32.totalorder %s24, %s25
    %p39 = scmp.eq.s32.totalorder %s17, 1
    %p40 = por %p38, %p39
    %p42 = scmp.ne.s32.totalorder %s25, %s41
    %p43 = scmp.eq.s32.totalorder %s17, 0
    %p44 = por %p42, %p43
    %s46 = sadd.s32 %s45, 1
    %p49 = scmp.eq.s32.totalorder %s11, 1
    %p50 = scmp.ne.s32.totalorder %s45, %s47
    %p51 = scmp.eq.s32.totalorder %s11, 0
    %p52 = por %p50, %p51
    %p53 = scmp.ne.s32.totalorder %s45, %s47
    %p54 = scmp.eq.s32.totalorder %s16, 1
    %p55 = por %p53, %p54
    %p56 = scmp.ne.s32.totalorder %s47, %s48
    %p57 = scmp.eq.s32.totalorder %s16, 0
    %p58 = por %p56, %p57
    %p59 = scmp.ne.s32.totalorder %s47, %s48
    %p60 = scmp.eq.s32.totalorder %s17, 1
    %p61 = por %p59, %p60
    %p63 = scmp.ne.s32.totalorder %s48, %s62
    %p64 = scmp.eq.s32.totalorder %s17, 0
    %p65 = por %p63, %p64
    %s67 = sadd.s32 %s66, 1
    %p70 = scmp.eq.s32.totalorder %s11, 1
    %p71 = scmp.ne.s32.totalorder %s66, %s68
    %p72 = scmp.eq.s32.totalorder %s11, 0
    %p73 = por %p71, %p72
    %p74 = scmp.ne.s32.totalorder %s66, %s68
    %p75 = scmp.eq.s32.totalorder %s16, 1
    %p76 = por %p74, %p75
    %p77 = scmp.ne.s32.totalorder %s68, %s69
    %p78 = scmp.eq.s32.totalorder %s16, 0
    %p79 = por %p77, %p78
    %p80 = scmp.ne.s32.totalorder %s68, %s69
    %p81 = scmp.eq.s32.totalorder %s17, 1
    %p82 = por %p80, %p81
    %p84 = scmp.ne.s32.totalorder %s69, %s83
    %p85 = scmp.eq.s32.totalorder %s17, 0
    %p86 = por %p84, %p85
    %s88 = sadd.s32 %s87, 1
    %p91 = scmp.eq.s32.totalorder %s11, 1
    %p92 = scmp.ne.s32.totalorder %s87, %s89
    %p93 = scmp.eq.s32.totalorder %s11, 0
    %p94 = por %p92, %p93
    %p95 = scmp.ne.s32.totalorder %s87, %s89
    %p96 = scmp.eq.s32.totalorder %s16, 1
    %p97 = por %p95, %p96
    %p98 = scmp.ne.s32.totalorder %s89, %s90
    %p99 = scmp.eq.s32.totalorder %s16, 0
    %p100 = por %p98, %p99
    %p101 = scmp.ne.s32.totalorder %s89, %s90
    %p102 = scmp.eq.s32.totalorder %s17, 1
    %p103 = por %p101, %p102
    %p105 = scmp.ne.s32.totalorder %s90, %s104
    %p106 = scmp.eq.s32.totalorder %s17, 0
    %p107 = por %p105, %p106
    %s109 = sadd.s32 %s108, 1
    %p112 = scmp.eq.s32.totalorder %s11, 1
    %p113 = scmp.ne.s32.totalorder %s108, %s110
    %p114 = scmp.eq.s32.totalorder %s11, 0
    %p115 = por %p113, %p114
    %p116 = scmp.ne.s32.totalorder %s108, %s110
    %p117 = scmp.eq.s32.totalorder %s16, 1
    %p118 = por %p116, %p117
    %p119 = scmp.ne.s32.totalorder %s110, %s111
    %p120 = scmp.eq.s32.totalorder %s16, 0
    %p121 = por %p119, %p120
    %p122 = scmp.ne.s32.totalorder %s110, %s111
    %p123 = scmp.eq.s32.totalorder %s17, 1
    %p124 = por %p122, %p123
    %p126 = scmp.ne.s32.totalorder %s111, %s125
    %p127 = scmp.eq.s32.totalorder %s17, 0
    %p128 = por %p126, %p127
    %s129 = ssub.s32 %s11, %s18
    %p130 = scmp.eq.s32.totalorder %s129, 0
    %s132 = sadd.s32 %s131, 1
    %s133 = scalar_select %p130, %s131, %s132
    %p136 = pneg %p130
    %p137 = scmp.eq.s32.totalorder %s11, 1
    %p138 = por %p136, %p137
    %p139 = scmp.ne.s32.totalorder %s131, %s134
    %p140 = scmp.eq.s32.totalorder %s11, 0
    %p141 = por %p139, %p140
    %p142 = scmp.ne.s32.totalorder %s131, %s134
    %p143 = scmp.eq.s32.totalorder %s16, 1
    %p144 = por %p142, %p143
    %p145 = scmp.ne.s32.totalorder %s134, %s135
    %p146 = scmp.eq.s32.totalorder %s16, 0
    %p147 = por %p145, %p146
    %p148 = scmp.ne.s32.totalorder %s134, %s135
    %p149 = scmp.eq.s32.totalorder %s17, 1
    %p150 = por %p148, %p149
    %p152 = scmp.ne.s32.totalorder %s135, %s151
    %p153 = scmp.eq.s32.totalorder %s17, 0
    %p154 = por %p152, %p153
    %p155 = scmp.le.s32.totalorder 1, %s11
    %p156 = scmp.lt.s32.totalorder %s11, 3
    %p157 = pnand %p155, %p156
    %p158 = pneg %p157
    // Predicated region
    $region9: #{quater_cross_transformer.1} parent=5 // pred_check
      _
    $region10: #{quater_cross_transformer.1} parent=5 // pred_check_branch
      %160 = sbr.rel (%p157) target = $region12
    $region11: #{quater_cross_transformer.1} parent=5 // pred_region
      %s161 = ssub.s32 %s11, 1
      // Predicated region
      $region13: #{quater_cross_transformer.1} parent=11 // pred_check
        %p162 = pneg %p58
      $region14: #{quater_cross_transformer.1} parent=11 // pred_check_branch
        %164 = sbr.rel (%p162) target = $region16
      $region15: #{quater_cross_transformer.1} parent=11 // pred_region
        _
      $region16: #{quater_cross_transformer.1} parent=11 // pred_fallthru
        _
      // Predicated region
      $region17: #{quater_cross_transformer.1} parent=11 // pred_check
        %p165 = pneg %p79
      $region18: #{quater_cross_transformer.1} parent=11 // pred_check_branch
        %167 = sbr.rel (%p165) target = $region20
      $region19: #{quater_cross_transformer.1} parent=11 // pred_region
        _
      $region20: #{quater_cross_transformer.1} parent=11 // pred_fallthru
        _
      // Predicated region
      $region21: #{quater_cross_transformer.1} parent=11 // pred_check
        %p168 = pneg %p100
      $region22: #{quater_cross_transformer.1} parent=11 // pred_check_branch
        %170 = sbr.rel (%p168) target = $region24
      $region23: #{quater_cross_transformer.1} parent=11 // pred_region
        _
      $region24: #{quater_cross_transformer.1} parent=11 // pred_fallthru
        _
      // Predicated region
      $region25: #{quater_cross_transformer.1} parent=11 // pred_check
        %p171 = pneg %p121
      $region26: #{quater_cross_transformer.1} parent=11 // pred_check_branch
        %173 = sbr.rel (%p171) target = $region28
      $region27: #{quater_cross_transformer.1} parent=11 // pred_region
        _
      $region28: #{quater_cross_transformer.1} parent=11 // pred_fallthru
        _
    $region12: #{quater_cross_transformer.1} parent=5 // pred_fallthru
      _
    %p174 = scmp.lt.s32.totalorder %s11, 2
    // Predicated region
    $region29: #{quater_cross_transformer.1} parent=5 // pred_check
      %p175 = pneg %p174
    $region30: #{quater_cross_transformer.1} parent=5 // pred_check_branch
      %177 = sbr.rel (%p175) target = $region32
    $region31: #{quater_cross_transformer.1} parent=5 // pred_region
      // Predicated region
      $region33: #{quater_cross_transformer.1} parent=31 // pred_check
        %p178 = pneg %p31
      $region34: #{quater_cross_transformer.1} parent=31 // pred_check_branch
        %180 = sbr.rel (%p178) target = $region36
      $region35: #{quater_cross_transformer.1} parent=31 // pred_region
        %p181 = scmp.lt.s32.totalorder %s11, 1
        %s182 = scalar_select %p181, %s11, 1
        %s183 = smul.addr %s182, 4
        %s184 = scalar_lea.vmem %s0, %s183
      $region36: #{quater_cross_transformer.1} parent=31 // pred_fallthru
        _
    $region32: #{quater_cross_transformer.1} parent=5 // pred_fallthru
      _
    %p185 = scmp.le.s32.totalorder 1, %s11
    %p186 = scmp.lt.s32.totalorder %s11, 3
    %p187 = pnand %p185, %p186
    %p188 = pneg %p187
    // Predicated region
    $region37: #{quater_cross_transformer.1} parent=5 // pred_check
      _
    $region38: #{quater_cross_transformer.1} parent=5 // pred_check_branch
      %190 = sbr.rel (%p187) target = $region40
    $region39: #{quater_cross_transformer.1} parent=5 // pred_region
      %s191 = ssub.s32 %s11, 1
      %p192 = scmp.lt.s32.totalorder %s16, 1
      %s193 = scalar_select %p192, %s16, 1
      %s194 = smul.addr %s193, 4
      %s195 = scalar_lea.vmem %s0, %s194
      %p196 = pneg %p37
      %p197 = pneg %p34
      %p198 = pneg %p58
      %p199 = pneg %p55
      %p200 = pneg %p79
      %p201 = pneg %p76
      %p202 = pneg %p100
      %p203 = pneg %p97
      %p204 = pneg %p121
      %p205 = pneg %p118
      %p206 = pneg %p147
      %p207 = pneg %p144
      %p208 = scmp.lt.s32.totalorder %s16, 1
      %s209 = scalar_select %p208, %s16, 1
      %s210 = smul.addr %s209, 8
      %s211 = scalar_lea.vmem %s5, %s210
      %p212 = scmp.lt.s32.totalorder %s16, 1
      %s213 = scalar_select %p212, %s16, 1
      %s214 = smul.addr %s213, 4
      %s215 = scalar_lea.vmem %s0, %s214
      %p216 = scmp.lt.s32.totalorder %s16, 1
      %s217 = scalar_select %p216, %s16, 1
      %s218 = smul.addr %s217, 8
      %s219 = scalar_lea.vmem %s5, %s218
      %v220 = vld [vmem:[%s215] sm:$0xf]
      %v221 = vunpack.c.l.bf16 %v220
      %222 = vst [vmem:[#allocation2] sm:$0xff] %v221
      %v223 = vld [vmem:[#allocation2] sm:$0xff]
      %v224 = vld [vmem:[%s1] sm:$0xff]
      %v225 = vld [vmem:[%s2] sm:$0xf]
      %v226 = vld [vmem:[%s2 + $0x4] sm:$0xf]
      %v227 = vld [vmem:[%s2 + $0x8] sm:$0xf]
      %v228 = vld [vmem:[%s2 + $0xc] sm:$0xf]
      %v229 = vld [vmem:[%s2 + $0x10] sm:$0xf]
      %v230 = vld [vmem:[%s2 + $0x14] sm:$0xf]
      %v231 = vld [vmem:[%s2 + $0x18] sm:$0xf]
      %v232 = vld [vmem:[%s2 + $0x1c] sm:$0xf]
      %v233 = vld [vmem:[%s2 + $0x20] sm:$0xf]
      %v234 = vld [vmem:[%s2 + $0x24] sm:$0xf]
      %v235 = vld [vmem:[%s2 + $0x28] sm:$0xf]
      %v236 = vld [vmem:[%s2 + $0x2c] sm:$0xf]
      %v237 = vld [vmem:[%s2 + $0x30] sm:$0xf]
      %v238 = vld [vmem:[%s2 + $0x34] sm:$0xf]
      %v239 = vld [vmem:[%s2 + $0x38] sm:$0xf]
      %v240 = vld [vmem:[%s2 + $0x3c] sm:$0xf]
      %v241 = vld [vmem:[%s3] sm:$0xf]
      %v242 = vld [vmem:[%s3 + $0x4] sm:$0xf]
      %v243 = vld [vmem:[%s3 + $0x8] sm:$0xf]
      %v244 = vld [vmem:[%s3 + $0xc] sm:$0xf]
      %v245 = vld [vmem:[%s3 + $0x10] sm:$0xf]
      %v246 = vld [vmem:[%s3 + $0x14] sm:$0xf]
      %v247 = vld [vmem:[%s3 + $0x18] sm:$0xf]
      %v248 = vld [vmem:[%s3 + $0x1c] sm:$0xf]
      %v249 = vld [vmem:[%s3 + $0x20] sm:$0xf]
      %v250 = vld [vmem:[%s3 + $0x24] sm:$0xf]
      %v251 = vld [vmem:[%s3 + $0x28] sm:$0xf]
      %v252 = vld [vmem:[%s3 + $0x2c] sm:$0xf]
      %v253 = vld [vmem:[%s3 + $0x30] sm:$0xf]
      %v254 = vld [vmem:[%s3 + $0x34] sm:$0xf]
      %v255 = vld [vmem:[%s3 + $0x38] sm:$0xf]
      %v256 = vld [vmem:[%s3 + $0x3c] sm:$0xf]
      %v257 = vld [vmem:[%s4] sm:$0xf]
      %v258 = vld [vmem:[%s4 + $0x4] sm:$0xf]
      %v259 = vld [vmem:[%s4 + $0x8] sm:$0xf]
      %v260 = vld [vmem:[%s4 + $0xc] sm:$0xf]
      %v261 = vld [vmem:[%s4 + $0x10] sm:$0xf]
      %v262 = vld [vmem:[%s4 + $0x14] sm:$0xf]
      %v263 = vld [vmem:[%s4 + $0x18] sm:$0xf]
      %v264 = vld [vmem:[%s4 + $0x1c] sm:$0xf]
      %v265 = vld [vmem:[%s4 + $0x20] sm:$0xf]
      %v266 = vld [vmem:[%s4 + $0x24] sm:$0xf]
      %v267 = vld [vmem:[%s4 + $0x28] sm:$0xf]
      %v268 = vld [vmem:[%s4 + $0x2c] sm:$0xf]
      %v269 = vld [vmem:[%s4 + $0x30] sm:$0xf]
      %v270 = vld [vmem:[%s4 + $0x34] sm:$0xf]
      %v271 = vld [vmem:[%s4 + $0x38] sm:$0xf]
      %v272 = vld [vmem:[%s4 + $0x3c] sm:$0xf]
      %273 = vadd.xlane.f32.xlu0 %v223
      %v274 = vpop.xlane.xlu0 %273
      %v275 = vmul.f32 %v274, 0.03125
      %v276 = vmul.f32 %v223, %v223
      %277 = vadd.xlane.f32.xlu0 %v276
      %v278 = vpop.xlane.xlu0 %277
      %v279 = vmul.f32 %v278, 0.03125
      %v280 = vmul.f32 %v275, %v275
      %v281 = vsub.f32 %v279, %v280
      %v282 = vsub.f32 %v223, %v275
      %v283 = vadd.f32 %v281, 1e-05
      %v284 = vrsqrt.pop %v283
      %v285 = vmul.f32 %v284, %v283
      %v286 = vmul.f32 %v285, %v284
      %v287 = vmul.f32 0.5, %v286
      %v288 = vsub.f32 1.5, %v287
      %v289 = vmul.f32 %v284, %v288
      %vm290 = vweird.f32 %v283
      %vm291 = vweird.f32 %v284
      %vm292 = vmor %vm290, %vm291
      %v293 = vsel %vm292, %v284, %v289
      %v294 = vmul.f32 %v282, %v293
      %v295 = vperm.slane %v224, 0
      %v296 = vmul.f32 %v294, %v295
      %v297 = vperm.slane %v224, 1
      %v298 = vadd.f32 %v296, %v297
      %v299 = vpack.c.bf16 %v298, %v298
      %v300 = vperm.slane %v224, 2
      %v317 = vunpack.c.l.b16 %v225
      %v318 = vunpack.c.l.b16 %v226
      %v319 = vunpack.c.l.b16 %v227
      %v320 = vunpack.c.l.b16 %v228
      %v321 = vunpack.c.l.b16 %v229
      %v322 = vunpack.c.l.b16 %v230
      %v323 = vunpack.c.l.b16 %v231
      %v324 = vunpack.c.l.b16 %v232
      %v325 = vunpack.c.l.b16 %v233
      %v326 = vunpack.c.l.b16 %v234
      %v327 = vunpack.c.l.b16 %v235
      %v328 = vunpack.c.l.b16 %v236
      %v329 = vunpack.c.l.b16 %v237
      %v330 = vunpack.c.l.b16 %v238
      %v331 = vunpack.c.l.b16 %v239
      %v332 = vunpack.c.l.b16 %v240
      %v333 = vpack.c.b16 %v318, %v317
      %v334 = vpack.c.b16 %v320, %v319
      %v335 = vpack.c.b16 %v322, %v321
      %v336 = vpack.c.b16 %v324, %v323
      %v337 = vpack.c.b16 %v326, %v325
      %v338 = vpack.c.b16 %v328, %v327
      %v339 = vpack.c.b16 %v330, %v329
      %v340 = vpack.c.b16 %v332, %v331
      %349 = vmatpush.bf16.msra.mxu0 %v340
      %350 = vmatpush.bf16.msra.mxu0 %v339
      %351 = vmatpush.bf16.msra.mxu0 %v338
      %352 = vmatpush.bf16.msra.mxu0 %v337
      %353 = vmatpush.bf16.msra.mxu0 %v336
      %354 = vmatpush.bf16.msra.mxu0 %v335
      %355 = vmatpush.bf16.msra.mxu0 %v334
      %356 = vmatpush.bf16.msra.mxu0 %v333
      %357 = vmatmul.bf16.gmra.mxu0 %v299
      %v358 = vpop.f32.mrf.mxu0
      %v359 = vadd.f32 %v300, %v358
      %v360 = vpop.f32.mrf.mxu0
      %361 = vdwg.mxu0
      %v362 = vadd.f32 %v359, %v223
      %363 = vadd.xlane.f32.xlu0 %v362
      %v364 = vpop.xlane.xlu0 %363
      %v365 = vmul.f32 %v364, 0.03125
      %v366 = vmul.f32 %v362, %v362
      %367 = vadd.xlane.f32.xlu0 %v366
      %v368 = vpop.xlane.xlu0 %367
      %v369 = vmul.f32 %v368, 0.03125
      %v370 = vmul.f32 %v365, %v365
      %v371 = vsub.f32 %v369, %v370
      %v372 = vsub.f32 %v362, %v365
      %v373 = vadd.f32 %v371, 1e-05
      %v374 = vrsqrt.pop %v373
      %v375 = vmul.f32 %v374, %v373
      %v376 = vmul.f32 %v375, %v374
      %v377 = vmul.f32 0.5, %v376
      %v378 = vsub.f32 1.5, %v377
      %v379 = vmul.f32 %v374, %v378
      %vm380 = vweird.f32 %v373
      %vm381 = vweird.f32 %v374
      %vm382 = vmor %vm380, %vm381
      %v383 = vsel %vm382, %v374, %v379
      %v384 = vmul.f32 %v372, %v383
      %v385 = vperm.slane %v224, 3
      %v386 = vmul.f32 %v384, %v385
      %v387 = vperm.slane %v224, 4
      %v388 = vadd.f32 %v386, %v387
      %v389 = vpack.c.bf16 %v388, %v388
      %v390 = vperm.slane %v224, 5
      %v407 = vunpack.c.l.b16 %v241
      %v408 = vunpack.c.l.b16 %v242
      %v409 = vunpack.c.l.b16 %v243
      %v410 = vunpack.c.l.b16 %v244
      %v411 = vunpack.c.l.b16 %v245
      %v412 = vunpack.c.l.b16 %v246
      %v413 = vunpack.c.l.b16 %v247
      %v414 = vunpack.c.l.b16 %v248
      %v415 = vunpack.c.l.b16 %v249
      %v416 = vunpack.c.l.b16 %v250
      %v417 = vunpack.c.l.b16 %v251
      %v418 = vunpack.c.l.b16 %v252
      %v419 = vunpack.c.l.b16 %v253
      %v420 = vunpack.c.l.b16 %v254
      %v421 = vunpack.c.l.b16 %v255
      %v422 = vunpack.c.l.b16 %v256
      %v423 = vpack.c.b16 %v408, %v407
      %v424 = vpack.c.b16 %v410, %v409
      %v425 = vpack.c.b16 %v412, %v411
      %v426 = vpack.c.b16 %v414, %v413
      %v427 = vpack.c.b16 %v416, %v415
      %v428 = vpack.c.b16 %v418, %v417
      %v429 = vpack.c.b16 %v420, %v419
      %v430 = vpack.c.b16 %v422, %v421
      %439 = vmatpush.bf16.msra.mxu0 %v430
      %440 = vmatpush.bf16.msra.mxu0 %v429
      %441 = vmatpush.bf16.msra.mxu0 %v428
      %442 = vmatpush.bf16.msra.mxu0 %v427
      %443 = vmatpush.bf16.msra.mxu0 %v426
      %444 = vmatpush.bf16.msra.mxu0 %v425
      %445 = vmatpush.bf16.msra.mxu0 %v424
      %446 = vmatpush.bf16.msra.mxu0 %v423
      %447 = vmatmul.bf16.gmra.mxu0 %v389
      %v448 = vpop.f32.mrf.mxu0
      %v449 = vadd.f32 %v390, %v448
      %v450 = vpop.f32.mrf.mxu0
      %451 = vdwg.mxu0
      %v452 = vmul.f32 %v449, 0.5
      %v453 = vmul.f32 %v449, 0.044715
      %v454 = vmul.f32 %v453, %v449
      %v455 = vmul.f32 %v454, %v449
      %v456 = vadd.f32 %v449, %v455
      %v457 = vmul.f32 %v456, 0.7978846
      %v458 = vtanh.pop %v457
      %v459 = vadd.f32 %v458, 1.0
      %v460 = vmul.f32 %v452, %v459
      %v461 = vpack.c.bf16 %v460, %v460
      %v462 = vperm.slane %v224, 6
      %v479 = vunpack.c.l.b16 %v257
      %v480 = vunpack.c.l.b16 %v258
      %v481 = vunpack.c.l.b16 %v259
      %v482 = vunpack.c.l.b16 %v260
      %v483 = vunpack.c.l.b16 %v261
      %v484 = vunpack.c.l.b16 %v262
      %v485 = vunpack.c.l.b16 %v263
      %v486 = vunpack.c.l.b16 %v264
      %v487 = vunpack.c.l.b16 %v265
      %v488 = vunpack.c.l.b16 %v266
      %v489 = vunpack.c.l.b16 %v267
      %v490 = vunpack.c.l.b16 %v268
      %v491 = vunpack.c.l.b16 %v269
      %v492 = vunpack.c.l.b16 %v270
      %v493 = vunpack.c.l.b16 %v271
      %v494 = vunpack.c.l.b16 %v272
      %v495 = vpack.c.b16 %v480, %v479
      %v496 = vpack.c.b16 %v482, %v481
      %v497 = vpack.c.b16 %v484, %v483
      %v498 = vpack.c.b16 %v486, %v485
      %v499 = vpack.c.b16 %v488, %v487
      %v500 = vpack.c.b16 %v490, %v489
      %v501 = vpack.c.b16 %v492, %v491
      %v502 = vpack.c.b16 %v494, %v493
      %511 = vmatpush.bf16.msra.mxu0 %v502
      %512 = vmatpush.bf16.msra.mxu0 %v501
      %513 = vmatpush.bf16.msra.mxu0 %v500
      %514 = vmatpush.bf16.msra.mxu0 %v499
      %515 = vmatpush.bf16.msra.mxu0 %v498
      %516 = vmatpush.bf16.msra.mxu0 %v497
      %517 = vmatpush.bf16.msra.mxu0 %v496
      %518 = vmatpush.bf16.msra.mxu0 %v495
      %519 = vmatmul.bf16.gmra.mxu0 %v461
      %v520 = vpop.f32.mrf.mxu0
      %v521 = vadd.f32 %v462, %v520
      %v522 = vpop.f32.mrf.mxu0
      %523 = vdwg.mxu0
      %v524 = vadd.f32 %v521, %v362
      %525 = vst [vmem:[#allocation2] sm:$0xff] %v524
      %v526 = vld [vmem:[#allocation2] sm:$0xff]
      %s527 = scalar_lea.vmem %s1, 8
      %v528 = vld [vmem:[%s527] sm:$0xff]
      %s529 = scalar_lea.vmem %s2, 64
      %v530 = vld [vmem:[%s529] sm:$0xf]
      %v531 = vld [vmem:[%s529 + $0x4] sm:$0xf]
      %v532 = vld [vmem:[%s529 + $0x8] sm:$0xf]
      %v533 = vld [vmem:[%s529 + $0xc] sm:$0xf]
      %v534 = vld [vmem:[%s529 + $0x10] sm:$0xf]
      %v535 = vld [vmem:[%s529 + $0x14] sm:$0xf]
      %v536 = vld [vmem:[%s529 + $0x18] sm:$0xf]
      %v537 = vld [vmem:[%s529 + $0x1c] sm:$0xf]
      %v538 = vld [vmem:[%s529 + $0x20] sm:$0xf]
      %v539 = vld [vmem:[%s529 + $0x24] sm:$0xf]
      %v540 = vld [vmem:[%s529 + $0x28] sm:$0xf]
      %v541 = vld [vmem:[%s529 + $0x2c] sm:$0xf]
      %v542 = vld [vmem:[%s529 + $0x30] sm:$0xf]
      %v543 = vld [vmem:[%s529 + $0x34] sm:$0xf]
      %v544 = vld [vmem:[%s529 + $0x38] sm:$0xf]
      %v545 = vld [vmem:[%s529 + $0x3c] sm:$0xf]
      %s546 = scalar_lea.vmem %s3, 64
      %v547 = vld [vmem:[%s546] sm:$0xf]
      %v548 = vld [vmem:[%s546 + $0x4] sm:$0xf]
      %v549 = vld [vmem:[%s546 + $0x8] sm:$0xf]
      %v550 = vld [vmem:[%s546 + $0xc] sm:$0xf]
      %v551 = vld [vmem:[%s546 + $0x10] sm:$0xf]
      %v552 = vld [vmem:[%s546 + $0x14] sm:$0xf]
      %v553 = vld [vmem:[%s546 + $0x18] sm:$0xf]
      %v554 = vld [vmem:[%s546 + $0x1c] sm:$0xf]
      %v555 = vld [vmem:[%s546 + $0x20] sm:$0xf]
      %v556 = vld [vmem:[%s546 + $0x24] sm:$0xf]
      %v557 = vld [vmem:[%s546 + $0x28] sm:$0xf]
      %v558 = vld [vmem:[%s546 + $0x2c] sm:$0xf]
      %v559 = vld [vmem:[%s546 + $0x30] sm:$0xf]
      %v560 = vld [vmem:[%s546 + $0x34] sm:$0xf]
      %v561 = vld [vmem:[%s546 + $0x38] sm:$0xf]
      %v562 = vld [vmem:[%s546 + $0x3c] sm:$0xf]
      %s563 = scalar_lea.vmem %s4, 64
      %v564 = vld [vmem:[%s563] sm:$0xf]
      %v565 = vld [vmem:[%s563 + $0x4] sm:$0xf]
      %v566 = vld [vmem:[%s563 + $0x8] sm:$0xf]
      %v567 = vld [vmem:[%s563 + $0xc] sm:$0xf]
      %v568 = vld [vmem:[%s563 + $0x10] sm:$0xf]
      %v569 = vld [vmem:[%s563 + $0x14] sm:$0xf]
      %v570 = vld [vmem:[%s563 + $0x18] sm:$0xf]
      %v571 = vld [vmem:[%s563 + $0x1c] sm:$0xf]
      %v572 = vld [vmem:[%s563 + $0x20] sm:$0xf]
      %v573 = vld [vmem:[%s563 + $0x24] sm:$0xf]
      %v574 = vld [vmem:[%s563 + $0x28] sm:$0xf]
      %v575 = vld [vmem:[%s563 + $0x2c] sm:$0xf]
      %v576 = vld [vmem:[%s563 + $0x30] sm:$0xf]
      %v577 = vld [vmem:[%s563 + $0x34] sm:$0xf]
      %v578 = vld [vmem:[%s563 + $0x38] sm:$0xf]
      %v579 = vld [vmem:[%s563 + $0x3c] sm:$0xf]
      %580 = vadd.xlane.f32.xlu0 %v526
      %v581 = vpop.xlane.xlu0 %580
      %v582 = vmul.f32 %v581, 0.03125
      %v583 = vmul.f32 %v526, %v526
      %584 = vadd.xlane.f32.xlu0 %v583
      %v585 = vpop.xlane.xlu0 %584
      %v586 = vmul.f32 %v585, 0.03125
      %v587 = vmul.f32 %v582, %v582
      %v588 = vsub.f32 %v586, %v587
      %v589 = vsub.f32 %v526, %v582
      %v590 = vadd.f32 %v588, 1e-05
      %v591 = vrsqrt.pop %v590
      %v592 = vmul.f32 %v591, %v590
      %v593 = vmul.f32 %v592, %v591
      %v594 = vmul.f32 0.5, %v593
      %v595 = vsub.f32 1.5, %v594
      %v596 = vmul.f32 %v591, %v595
      %vm597 = vweird.f32 %v590
      %vm598 = vweird.f32 %v591
      %vm599 = vmor %vm597, %vm598
      %v600 = vsel %vm599, %v591, %v596
      %v601 = vmul.f32 %v589, %v600
      %v602 = vperm.slane %v528, 0
      %v603 = vmul.f32 %v601, %v602
      %v604 = vperm.slane %v528, 1
      %v605 = vadd.f32 %v603, %v604
      %v606 = vpack.c.bf16 %v605, %v605
      %v607 = vperm.slane %v528, 2
      %v624 = vunpack.c.l.b16 %v530
      %v625 = vunpack.c.l.b16 %v531
      %v626 = vunpack.c.l.b16 %v532
      %v627 = vunpack.c.l.b16 %v533
      %v628 = vunpack.c.l.b16 %v534
      %v629 = vunpack.c.l.b16 %v535
      %v630 = vunpack.c.l.b16 %v536
      %v631 = vunpack.c.l.b16 %v537
      %v632 = vunpack.c.l.b16 %v538
      %v633 = vunpack.c.l.b16 %v539
      %v634 = vunpack.c.l.b16 %v540
      %v635 = vunpack.c.l.b16 %v541
      %v636 = vunpack.c.l.b16 %v542
      %v637 = vunpack.c.l.b16 %v543
      %v638 = vunpack.c.l.b16 %v544
      %v639 = vunpack.c.l.b16 %v545
      %v640 = vpack.c.b16 %v625, %v624
      %v641 = vpack.c.b16 %v627, %v626
      %v642 = vpack.c.b16 %v629, %v628
      %v643 = vpack.c.b16 %v631, %v630
      %v644 = vpack.c.b16 %v633, %v632
      %v645 = vpack.c.b16 %v635, %v634
      %v646 = vpack.c.b16 %v637, %v636
      %v647 = vpack.c.b16 %v639, %v638
      %656 = vmatpush.bf16.msra.mxu0 %v647
      %657 = vmatpush.bf16.msra.mxu0 %v646
      %658 = vmatpush.bf16.msra.mxu0 %v645
      %659 = vmatpush.bf16.msra.mxu0 %v644
      %660 = vmatpush.bf16.msra.mxu0 %v643
      %661 = vmatpush.bf16.msra.mxu0 %v642
      %662 = vmatpush.bf16.msra.mxu0 %v641
      %663 = vmatpush.bf16.msra.mxu0 %v640
      %664 = vmatmul.bf16.gmra.mxu0 %v606
      %v665 = vpop.f32.mrf.mxu0
      %v666 = vadd.f32 %v607, %v665
      %v667 = vpop.f32.mrf.mxu0
      %668 = vdwg.mxu0
      %v669 = vadd.f32 %v666, %v526
      %670 = vadd.xlane.f32.xlu0 %v669
      %v671 = vpop.xlane.xlu0 %670
      %v672 = vmul.f32 %v671, 0.03125
      %v673 = vmul.f32 %v669, %v669
      %674 = vadd.xlane.f32.xlu0 %v673
      %v675 = vpop.xlane.xlu0 %674
      %v676 = vmul.f32 %v675, 0.03125
      %v677 = vmul.f32 %v672, %v672
      %v678 = vsub.f32 %v676, %v677
      %v679 = vsub.f32 %v669, %v672
      %v680 = vadd.f32 %v678, 1e-05
      %v681 = vrsqrt.pop %v680
      %v682 = vmul.f32 %v681, %v680
      %v683 = vmul.f32 %v682, %v681
      %v684 = vmul.f32 0.5, %v683
      %v685 = vsub.f32 1.5, %v684
      %v686 = vmul.f32 %v681, %v685
      %vm687 = vweird.f32 %v680
      %vm688 = vweird.f32 %v681
      %vm689 = vmor %vm687, %vm688
      %v690 = vsel %vm689, %v681, %v686
      %v691 = vmul.f32 %v679, %v690
      %v692 = vperm.slane %v528, 3
      %v693 = vmul.f32 %v691, %v692
      %v694 = vperm.slane %v528, 4
      %v695 = vadd.f32 %v693, %v694
      %v696 = vpack.c.bf16 %v695, %v695
      %v697 = vperm.slane %v528, 5
      %v714 = vunpack.c.l.b16 %v547
      %v715 = vunpack.c.l.b16 %v548
      %v716 = vunpack.c.l.b16 %v549
      %v717 = vunpack.c.l.b16 %v550
      %v718 = vunpack.c.l.b16 %v551
      %v719 = vunpack.c.l.b16 %v552
      %v720 = vunpack.c.l.b16 %v553
      %v721 = vunpack.c.l.b16 %v554
      %v722 = vunpack.c.l.b16 %v555
      %v723 = vunpack.c.l.b16 %v556
      %v724 = vunpack.c.l.b16 %v557
      %v725 = vunpack.c.l.b16 %v558
      %v726 = vunpack.c.l.b16 %v559
      %v727 = vunpack.c.l.b16 %v560
      %v728 = vunpack.c.l.b16 %v561
      %v729 = vunpack.c.l.b16 %v562
      %v730 = vpack.c.b16 %v715, %v714
      %v731 = vpack.c.b16 %v717, %v716
      %v732 = vpack.c.b16 %v719, %v718
      %v733 = vpack.c.b16 %v721, %v720
      %v734 = vpack.c.b16 %v723, %v722
      %v735 = vpack.c.b16 %v725, %v724
      %v736 = vpack.c.b16 %v727, %v726
      %v737 = vpack.c.b16 %v729, %v728
      %746 = vmatpush.bf16.msra.mxu0 %v737
      %747 = vmatpush.bf16.msra.mxu0 %v736
      %748 = vmatpush.bf16.msra.mxu0 %v735
      %749 = vmatpush.bf16.msra.mxu0 %v734
      %750 = vmatpush.bf16.msra.mxu0 %v733
      %751 = vmatpush.bf16.msra.mxu0 %v732
      %752 = vmatpush.bf16.msra.mxu0 %v731
      %753 = vmatpush.bf16.msra.mxu0 %v730
      %754 = vmatmul.bf16.gmra.mxu0 %v696
      %v755 = vpop.f32.mrf.mxu0
      %v756 = vadd.f32 %v697, %v755
      %v757 = vpop.f32.mrf.mxu0
      %758 = vdwg.mxu0
      %v759 = vmul.f32 %v756, 0.5
      %v760 = vmul.f32 %v756, 0.044715
      %v761 = vmul.f32 %v760, %v756
      %v762 = vmul.f32 %v761, %v756
      %v763 = vadd.f32 %v756, %v762
      %v764 = vmul.f32 %v763, 0.7978846
      %v765 = vtanh.pop %v764
      %v766 = vadd.f32 %v765, 1.0
      %v767 = vmul.f32 %v759, %v766
      %v768 = vpack.c.bf16 %v767, %v767
      %v769 = vperm.slane %v528, 6
      %v786 = vunpack.c.l.b16 %v564
      %v787 = vunpack.c.l.b16 %v565
      %v788 = vunpack.c.l.b16 %v566
      %v789 = vunpack.c.l.b16 %v567
      %v790 = vunpack.c.l.b16 %v568
      %v791 = vunpack.c.l.b16 %v569
      %v792 = vunpack.c.l.b16 %v570
      %v793 = vunpack.c.l.b16 %v571
      %v794 = vunpack.c.l.b16 %v572
      %v795 = vunpack.c.l.b16 %v573
      %v796 = vunpack.c.l.b16 %v574
      %v797 = vunpack.c.l.b16 %v575
      %v798 = vunpack.c.l.b16 %v576
      %v799 = vunpack.c.l.b16 %v577
      %v800 = vunpack.c.l.b16 %v578
      %v801 = vunpack.c.l.b16 %v579
      %v802 = vpack.c.b16 %v787, %v786
      %v803 = vpack.c.b16 %v789, %v788
      %v804 = vpack.c.b16 %v791, %v790
      %v805 = vpack.c.b16 %v793, %v792
      %v806 = vpack.c.b16 %v795, %v794
      %v807 = vpack.c.b16 %v797, %v796
      %v808 = vpack.c.b16 %v799, %v798
      %v809 = vpack.c.b16 %v801, %v800
      %818 = vmatpush.bf16.msra.mxu0 %v809
      %819 = vmatpush.bf16.msra.mxu0 %v808
      %820 = vmatpush.bf16.msra.mxu0 %v807
      %821 = vmatpush.bf16.msra.mxu0 %v806
      %822 = vmatpush.bf16.msra.mxu0 %v805
      %823 = vmatpush.bf16.msra.mxu0 %v804
      %824 = vmatpush.bf16.msra.mxu0 %v803
      %825 = vmatpush.bf16.msra.mxu0 %v802
      %826 = vmatmul.bf16.gmra.mxu0 %v768
      %v827 = vpop.f32.mrf.mxu0
      %v828 = vadd.f32 %v769, %v827
      %v829 = vpop.f32.mrf.mxu0
      %830 = vdwg.mxu0
      %v831 = vadd.f32 %v828, %v669
      %832 = vst [vmem:[#allocation2] sm:$0xff] %v831
      %v833 = vld [vmem:[#allocation2] sm:$0xff]
      %834 = vst [vmem:[%s219] sm:$0xff] %v833
      %p835 = scmp.lt.s32.totalorder %s16, 1
      %s836 = scalar_select %p835, %s16, 1
      %s837 = smul.addr %s836, 8
      %s838 = scalar_lea.vmem %s5, %s837
      // Predicated region
      $region41: #{quater_cross_transformer.1} parent=39 // pred_check
        %p839 = pneg %p144
      $region42: #{quater_cross_transformer.1} parent=39 // pred_check_branch
        %841 = sbr.rel (%p839) target = $region44
      $region43: #{quater_cross_transformer.1} parent=39 // pred_region
        _
      $region44: #{quater_cross_transformer.1} parent=39 // pred_fallthru
        _
    $region40: #{quater_cross_transformer.1} parent=5 // pred_fallthru
      _
    %p842 = scmp.le.s32.totalorder 2, %s11
    // Predicated region
    $region45: #{quater_cross_transformer.1} parent=5 // pred_check
      %p843 = pneg %p842
    $region46: #{quater_cross_transformer.1} parent=5 // pred_check_branch
      %845 = sbr.rel (%p843) target = $region48
    $region47: #{quater_cross_transformer.1} parent=5 // pred_region
      %s846 = ssub.s32 %s11, 2
      // Predicated region
      $region49: #{quater_cross_transformer.1} parent=47 // pred_check
        %p847 = pneg %p150
      $region50: #{quater_cross_transformer.1} parent=47 // pred_check_branch
        %849 = sbr.rel (%p847) target = $region52
      $region51: #{quater_cross_transformer.1} parent=47 // pred_region
        %p850 = scmp.lt.s32.totalorder %s17, 1
        %s851 = scalar_select %p850, %s17, 1
        %s852 = smul.addr %s851, 8
        %s853 = scalar_lea.vmem %s5, %s852
      $region52: #{quater_cross_transformer.1} parent=47 // pred_fallthru
        _
    $region48: #{quater_cross_transformer.1} parent=5 // pred_fallthru
      _
  $region6: #{quater_cross_transformer.1} parent=0 // loop_footer
    %s15 = sadd.s32 1, %s11
  $region7: #{quater_cross_transformer.1} parent=0 // loop_footer_branch
    %10 = sbr.rel target = $region3
  $region8: #{quater_cross_transformer.1} parent=0 // loop_exit
    _

</llo_original>
